<compile_context>
chip_gen: v6e
topology: v6e:2x2x1
jax: 0.10.0
libtpu: 0.0.40
codegen_flags: <defaults>
</compile_context>

<pallas_src>
import jax
import jax.numpy as jnp
from jax import lax
from jax.experimental import pallas as pl
from jax.experimental.pallas import tpu as pltpu


def _round_up(x, m):
    return ((x + m - 1) // m) * m


def _pick_tile_k(k_dim, target):
    """Largest multiple of 128 that divides k_dim and is <= max(target, 128)."""
    units = k_dim // 128
    m = max(min(target // 128, units), 1)
    while units % m:
        m -= 1
    return 128 * m


# ------------------------ kernel 1: energy + analytic gradient ------------------------
def make_energy_grad_kernel(num_layers, n_wb):
    """Ref order: an (T,1) i32, img (T,1) i32, fp (T,Dp), elem_exp (1,EHp) i32,
                  img_ids (1,M) i32, [W_0, b_0, ..., W_{L-1}, b_{L-1}] (batched, padded),
                  energy_out (1,1,M) per-tile partial, grad_out (T,Dp)."""
    num_hidden = num_layers - 1

    def kernel(*refs):
        an_ref, img_ref, fp_ref, elem_ref, imgid_ref = refs[:5]
        wb = refs[5:5 + n_wb]
        energy_ref, grad_ref = refs[5 + n_wb], refs[6 + n_wb]

        fp = fp_ref[...]                                             # (T, Dp)
        # element mask expanded to the concatenated (padded) E*H activation lanes
        mask = (an_ref[...] == elem_ref[...]).astype(jnp.float32)    # (T, EHp)

        # ---------- forward: one lane-dense matmul per layer, all elements batched ----------
        acts = []
        a = jnp.tanh(jnp.dot(fp, wb[0][...],
                             preferred_element_type=jnp.float32) + wb[1][...])
        acts.append(a)
        for l in range(1, num_hidden):                               # block-diag hidden layers
            a = jnp.tanh(jnp.dot(a, wb[2 * l][...],
                                 preferred_element_type=jnp.float32) + wb[2 * l + 1][...])
            acts.append(a)
        wf = wb[2 * num_hidden][...]                                 # (1, EHp) final weights
        bf = wb[2 * num_hidden + 1][...]                             # (1, EHp) final bias / H
        # width-1 final layer + element select as VPU mul + lane reduce (keeps MXU free)
        o = jnp.sum((a * wf + bf) * mask, axis=-1, keepdims=True)    # (T, 1) per-atom energy

        # ---------- per-image energy partial for this atom tile (scatter-add via mask) ----------
        imgoh = (img_ref[...] == imgid_ref[...]).astype(jnp.float32)  # (T, M)
        energy_ref[...] = jnp.sum(imgoh * o, axis=0, keepdims=True)[None]   # (1, 1, M)

        # ---------- analytic backward through the batched MLP (replaces autograd) ----------
        d = wf * mask                                                # d o / d a_last, (T, EHp)
        for l in range(num_hidden - 1, 0, -1):
            a_l = acts[l]
            d = d * (1.0 - a_l * a_l)                                # tanh'
            d = lax.dot_general(d, wb[2 * l][...],                   # d @ W_l.T (block diag)
                                (((1,), (1,)), ((), ())),
                                preferred_element_type=jnp.float32)
        a0 = acts[0]
        d = d * (1.0 - a0 * a0)
        grad_ref[...] = lax.dot_general(d, wb[0][...],               # d @ W_0.T -> (T, Dp)
                                        (((1,), (1,)), ((), ())),
                                        preferred_element_type=jnp.float32)

    return kernel


# ------------------------ kernel 2: forces = -(grad_flat @ fprimes) ------------------------
def forces_kernel(nz_ref, ksel_ref, g_ref, fpr_ref, out_ref):
    """Scalar-prefetched nz flags gate the MXU work; the index_map dedup (ksel) already
    suppressed the HBM DMA for all-zero k-tiles."""
    c = pl.program_id(0)
    k = pl.program_id(1)

    @pl.when(k == 0)
    def _():
        out_ref[...] = jnp.zeros_like(out_ref)

    @pl.when(nz_ref[c, k] != 0)
    def _():
        out_ref[...] -= jnp.dot(g_ref[...], fpr_ref[...],
                                preferred_element_type=jnp.float32)


# --------------------------------- wrapper / glue ---------------------------------
def _batch_element_params(params, elements, d_pad, eh_pad):
    """Concatenate per-element weights into lane-dense batched layers, zero-padded to
    (d_pad, eh_pad) so every matmul dim is a multiple of 128 (padding is exact)."""
    E = len(elements)
    L = len(params)
    W0, b0 = params[0]                              # (E, D, H), (E, H)
    D, H = W0.shape[1], W0.shape[2]
    EH = E * H
    W0c = jnp.transpose(W0, (1, 0, 2)).reshape(D, EH)               # (D, E*H)
    flat = [jnp.pad(W0c, ((0, d_pad - D), (0, eh_pad - EH))),
            jnp.pad(b0.reshape(1, EH), ((0, 0), (0, eh_pad - EH)))]
    for l in range(1, L - 1):
        Wl, bl = params[l]                          # (E, H, H), (E, H)
        Wb = jax.scipy.linalg.block_diag(*[Wl[e] for e in range(E)])  # (E*H, E*H)
        flat.append(jnp.pad(Wb, ((0, eh_pad - EH), (0, eh_pad - EH))))
        flat.append(jnp.pad(bl.reshape(1, EH), ((0, 0), (0, eh_pad - EH))))
    Wf, bf = params[-1]                             # (E, H, 1), (E, 1)
    flat.append(jnp.pad(Wf[:, :, 0].reshape(1, EH),
                        ((0, 0), (0, eh_pad - EH))))                 # final weights, flattened
    flat.append(jnp.pad((jnp.repeat(bf, H, axis=1) / H).reshape(1, EH),
                        ((0, 0), (0, eh_pad - EH))))                 # bias spread over H lanes
    return flat


def bpnn_forward(fingerprints, atomic_numbers, image_idx, fprimes, params,
                 elements, n_images, get_forces=True,
                 tile_n=256, tile_k=2048, tile_c=1024):
    """Pallas implementation of BPNN.forward -> (energy (M,), forces (N, 3))."""
    n_atoms, input_dim = fingerprints.shape
    n_elements = len(elements)
    num_layers = len(params)
    assert num_layers >= 2, "BPNN needs at least one hidden layer"

    hidden = params[0][0].shape[2]
    d_pad = _round_up(input_dim, 128)               # lane-dense fp / grad / MXU K dim
    eh = n_elements * hidden
    eh_pad = _round_up(eh, 128)                     # lane-dense activation / MXU N dim

    flat_wb = _batch_element_params(params, elements, d_pad, eh_pad)

    # --- pad atom axis to a tile multiple; padded atoms are fully masked (-1 ids) ---
    tile_n = min(tile_n, _round_up(n_atoms, 8))
    n_pad = _round_up(n_atoms, tile_n)
    n_tiles = n_pad // tile_n
    fp_pad = jnp.pad(fingerprints, ((0, n_pad - n_atoms), (0, d_pad - input_dim)))
    an_pad = jnp.pad(atomic_numbers.astype(jnp.int32).reshape(-1, 1),
                     ((0, n_pad - n_atoms), (0, 0)), constant_values=-1)
    img_pad = jnp.pad(image_idx.astype(jnp.int32).reshape(-1, 1),
                      ((0, n_pad - n_atoms), (0, 0)), constant_values=-1)

    elem_exp = jnp.pad(jnp.repeat(jnp.asarray(elements, jnp.int32), hidden),
                       (0, eh_pad - eh), constant_values=-2).reshape(1, eh_pad)
    img_ids = jnp.arange(n_images, dtype=jnp.int32).reshape(1, n_images)

    def const_spec(shape):
        return pl.BlockSpec(shape, lambda i: (0, 0))   # resident across atom tiles

    grid1 = (n_tiles,)
    in_specs = [
        pl.BlockSpec((tile_n, 1), lambda i: (i, 0)),              # atomic numbers
        pl.BlockSpec((tile_n, 1), lambda i: (i, 0)),              # image index
        pl.BlockSpec((tile_n, d_pad), lambda i: (i, 0)),          # fingerprints (lane-dense)
        const_spec((1, eh_pad)),                                  # expanded element ids
        const_spec((1, n_images)),                                # image ids
    ] + [const_spec(w.shape) for w in flat_wb]                    # batched weights
    out_specs = (
        pl.BlockSpec((1, 1, n_images), lambda i: (i, 0, 0)),      # per-tile energy partials
        pl.BlockSpec((tile_n, d_pad), lambda i: (i, 0)),          # grads, per-tile writeback
    )

    kernel1 = make_energy_grad_kernel(num_layers, 2 * num_layers)
    energy_parts, grads = pl.pallas_call(
        kernel1,
        grid=grid1,
        in_specs=in_specs,
        out_specs=out_specs,
        out_shape=(jax.ShapeDtypeStruct((n_tiles, 1, n_images), jnp.float32),
                   jax.ShapeDtypeStruct((n_pad, d_pad), jnp.float32)),
        compiler_params=pltpu.CompilerParams(
            dimension_semantics=("parallel",),      # per-tile partials -> megacore-shardable
            vmem_limit_bytes=48 << 20),
    )(an_pad, img_pad, fp_pad, elem_exp, img_ids, *flat_wb)

    energy = jnp.sum(energy_parts, axis=(0, 1))     # tiny XLA reduce over atom tiles

    if not get_forces:
        return energy, jnp.zeros((0,), jnp.float32)

    # --- kernel 2: tiled, block-sparse-skipping, bf16-streamed GEMV over fprimes ---
    c_dim = 3 * n_atoms
    k_dim = n_pad * d_pad
    tile_k = _pick_tile_k(k_dim, tile_k)            # divides k_dim -> grads reshaped, not padded
    tile_c = min(tile_c, _round_up(c_dim, 128))
    c_pad = _round_up(c_dim, tile_c)
    nkt = k_dim // tile_k
    nct = c_pad // tile_c

    # Re-lay fprimes rows (atom*D + d) into the padded (atom*d_pad + d) layout.
    fpr = fprimes.reshape(n_atoms, input_dim, fprimes.shape[1])
    fpr = jnp.pad(fpr, ((0, n_pad - n_atoms), (0, d_pad - input_dim),
                        (0, c_pad - fprimes.shape[1])))
    fprimes_pad = fpr.reshape(k_dim, c_pad)

    # Per-(c-tile, k-tile) nonzero flags + dedup'd k-block indices: zero tiles skip the MXU
    # via pl.when, and skip the HBM DMA because the block index repeats the previous one.
    blk_max = jnp.abs(fprimes_pad).reshape(nkt, tile_k, nct, tile_c).max(axis=(1, 3))
    nz_ck = (blk_max > 0).astype(jnp.int32).T                       # (nct, nkt)
    k_ids = jnp.arange(nkt, dtype=jnp.int32)[None, :]
    ksel_ck = jnp.maximum(lax.cummax(jnp.where(nz_ck > 0, k_ids, -1), axis=1), 0)
    ksel_ck = ksel_ck.astype(jnp.int32)                             # (nct, nkt)

    # bf16 streams on the bandwidth-bound path; accumulation stays f32 in-kernel.
    gflat = grads.astype(jnp.bfloat16).reshape(1, k_dim)
    fprimes_bf = fprimes_pad.astype(jnp.bfloat16)

    forces_flat = pl.pallas_call(
        forces_kernel,
        grid_spec=pltpu.PrefetchScalarGridSpec(
            num_scalar_prefetch=2,
            grid=(nct, nkt),
            in_specs=[
                pl.BlockSpec((1, tile_k), lambda c, k, nz, ks: (0, ks[c, k])),
                pl.BlockSpec((tile_k, tile_c), lambda c, k, nz, ks: (ks[c, k], c)),
            ],
            out_specs=pl.BlockSpec((1, tile_c), lambda c, k, nz, ks: (0, c)),
        ),
        out_shape=jax.ShapeDtypeStruct((1, c_pad), jnp.float32),
        compiler_params=pltpu.CompilerParams(
            dimension_semantics=("parallel", "arbitrary"),
            vmem_limit_bytes=48 << 20),
    )(nz_ck, ksel_ck, gflat, fprimes_bf)

    forces = forces_flat[0, :c_dim].reshape(n_atoms, 3)
    return energy, forces


# ------------------------- pure-JAX reference (for checking) -------------------------
def ref_forward(fingerprints, atomic_numbers, image_idx, fprimes, params,
                elements, n_images):
    elements_arr = jnp.asarray(elements, jnp.int32)
    mask = (atomic_numbers[:, None] == elements_arr[None, :]).astype(jnp.float32)
    num_layers = len(params)

    def per_atom(fp):
        outs = []
        for e in range(len(elements)):
            a = fp
            for l in range(num_layers - 1):
                a = jnp.tanh(a @ params[l][0][e] + params[l][1][e])
            outs.append(a @ params[-1][0][e] + params[-1][1][e])
        return jnp.sum(mask * jnp.concatenate(outs, axis=1), axis=1)

    o = per_atom(fingerprints)
    energy = jnp.zeros((n_images,), jnp.float32).at[image_idx].add(o)
    g = jax.grad(lambda x: jnp.sum(per_atom(x)))(fingerprints)
    forces = -(g.reshape(1, -1) @ fprimes).reshape(-1, 3)
    return energy, forces


if __name__ == "__main__":
    key = jax.random.PRNGKey(0)

    N_ATOMS, INPUT_DIM, NUM_NODES, NUM_LAYERS = 8, 16, 32, 3
    ELEMENTS = [1, 8]          # e.g. H and O
    N_IMAGES = 2

    # Per-element MLP params: num_layers Linears (D->H, H->H, ..., H->1), Tanh between.
    dims = [INPUT_DIM] + [NUM_NODES] * (NUM_LAYERS - 1) + [1]
    params = []
    for l in range(NUM_LAYERS):
        key, kw, kb = jax.random.split(key, 3)
        W = jax.random.uniform(kw, (len(ELEMENTS), dims[l], dims[l + 1]),
                               jnp.float32, -0.5, 0.5)
        b = jax.random.uniform(kb, (len(ELEMENTS), dims[l + 1]),
                               jnp.float32, -0.1, 0.1)
        params.append((W, b))

    key, kfp, kpr = jax.random.split(key, 3)
    fingerprints = jax.random.normal(kfp, (N_ATOMS, INPUT_DIM), jnp.float32)
    atomic_numbers = jnp.array([1, 1, 8, 8, 1, 8, 1, 8], jnp.int32)
    image_idx = jnp.array([0, 0, 0, 0, 1, 1, 1, 1], jnp.int32)
    fprimes = 0.05 * jax.random.normal(kpr, (N_ATOMS * INPUT_DIM, 3 * N_ATOMS),
                                       jnp.float32)
    # Zero the fingerprint-derivative rows of the last two atoms so some (k, c) tiles are
    # all-zero and the block-skip / DMA-dedup path in kernel 2 is actually exercised.
    fprimes = fprimes.at[6 * INPUT_DIM:, :].set(0.0)

    # Small tiles here so kernel 2 runs multiple k-tiles (incl. one skipped zero tile).
    energy, forces = bpnn_forward(fingerprints, atomic_numbers, image_idx,
                                  fprimes, params, ELEMENTS, N_IMAGES,
                                  get_forces=True, tile_k=256, tile_c=128)
    jax.block_until_ready((energy, forces))

    ref_e, ref_f = ref_forward(fingerprints, atomic_numbers, image_idx,
                               fprimes, params, ELEMENTS, N_IMAGES)
    assert energy.shape == (N_IMAGES,) and forces.shape == (N_ATOMS, 3)
    assert jnp.allclose(energy, ref_e, atol=1e-4, rtol=1e-4), (energy, ref_e)
    # bf16 fprimes/grads streams in kernel 2 -> looser force tolerance vs the f32 ref.
    assert jnp.allclose(forces, ref_f, atol=5e-3, rtol=5e-2), (forces, ref_f)

    print("KERNEL_OK")
</pallas_src>

<mosaic_0001>
module attributes {stable_mosaic.version = 11 : i64} {
  func.func @kernel(%arg0: i32, %arg1: memref<8x1xi32, #tpu.memory_space<vmem>>, %arg2: memref<8x1xi32, #tpu.memory_space<vmem>>, %arg3: memref<8x128xf32, #tpu.memory_space<vmem>>, %arg4: memref<1x128xi32, #tpu.memory_space<vmem>>, %arg5: memref<1x2xi32, #tpu.memory_space<vmem>>, %arg6: memref<128x128xf32, #tpu.memory_space<vmem>>, %arg7: memref<1x128xf32, #tpu.memory_space<vmem>>, %arg8: memref<128x128xf32, #tpu.memory_space<vmem>>, %arg9: memref<1x128xf32, #tpu.memory_space<vmem>>, %arg10: memref<1x128xf32, #tpu.memory_space<vmem>>, %arg11: memref<1x128xf32, #tpu.memory_space<vmem>>, %arg12: memref<1x1x2xf32, #tpu.memory_space<vmem>>, %arg13: memref<8x128xf32, #tpu.memory_space<vmem>>) attributes {dimension_semantics = [#tpu.dimension_semantics<parallel>], iteration_bounds = array<i64: 1>, scalar_prefetch = 0 : i64, scratch_operands = 0 : i64, tpu.core_type = #tpu.core_type<tc>, window_params = [{transform_indices = @transform_0, window_bounds = array<i64: 8, 1>}, {transform_indices = @transform_1, window_bounds = array<i64: 8, 1>}, {transform_indices = @transform_2, window_bounds = array<i64: 8, 128>}, {pipeline_mode = #tpu.pipeline_mode<synchronous>, transform_indices = @transform_3, window_bounds = array<i64: 1, 128>}, {pipeline_mode = #tpu.pipeline_mode<synchronous>, transform_indices = @transform_4, window_bounds = array<i64: 1, 2>}, {pipeline_mode = #tpu.pipeline_mode<synchronous>, transform_indices = @transform_5, window_bounds = array<i64: 128, 128>}, {pipeline_mode = #tpu.pipeline_mode<synchronous>, transform_indices = @transform_6, window_bounds = array<i64: 1, 128>}, {pipeline_mode = #tpu.pipeline_mode<synchronous>, transform_indices = @transform_7, window_bounds = array<i64: 128, 128>}, {pipeline_mode = #tpu.pipeline_mode<synchronous>, transform_indices = @transform_8, window_bounds = array<i64: 1, 128>}, {pipeline_mode = #tpu.pipeline_mode<synchronous>, transform_indices = @transform_9, window_bounds = array<i64: 1, 128>}, {pipeline_mode = #tpu.pipeline_mode<synchronous>, transform_indices = @transform_10, window_bounds = array<i64: 1, 128>}, {transform_indices = @transform_11, window_bounds = array<i64: 1, 1, 2>}, {transform_indices = @transform_12, window_bounds = array<i64: 8, 128>}]} {
    %c0 = arith.constant 0 : index
    %c0_0 = arith.constant 0 : index
    %0 = vector.load %arg3[%c0, %c0_0] : memref<8x128xf32, #tpu.memory_space<vmem>>, vector<8x128xf32>
    %c0_1 = arith.constant 0 : index
    %c0_2 = arith.constant 0 : index
    %1 = vector.load %arg1[%c0_1, %c0_2] : memref<8x1xi32, #tpu.memory_space<vmem>>, vector<8x1xi32>
    %c0_3 = arith.constant 0 : index
    %c0_4 = arith.constant 0 : index
    %2 = vector.load %arg4[%c0_3, %c0_4] : memref<1x128xi32, #tpu.memory_space<vmem>>, vector<1x128xi32>
    %3 = vector.broadcast %1 : vector<8x1xi32> to vector<8x128xi32>
    %4 = vector.broadcast %2 : vector<1x128xi32> to vector<8x128xi32>
    %5 = arith.cmpi eq, %3, %4 : vector<8x128xi32>
    %6 = arith.extui %5 : vector<8x128xi1> to vector<8x128xi32>
    %7 = arith.sitofp %6 : vector<8x128xi32> to vector<8x128xf32>
    %c0_5 = arith.constant 0 : index
    %c0_6 = arith.constant 0 : index
    %8 = vector.load %arg6[%c0_5, %c0_6] : memref<128x128xf32, #tpu.memory_space<vmem>>, vector<128x128xf32>
    %cst = arith.constant dense<0.000000e+00> : vector<8x128xf32>
    %9 = tpu.matmul %0, %8, %cst {dimension_numbers = #tpu.dot_dimension_numbers<[1], [0], [0], [1], [0, 0, 1, 1], [], []>} : vector<8x128xf32>, vector<128x128xf32>, vector<8x128xf32> -> vector<8x128xf32>
    %c0_7 = arith.constant 0 : index
    %c0_8 = arith.constant 0 : index
    %10 = vector.load %arg7[%c0_7, %c0_8] : memref<1x128xf32, #tpu.memory_space<vmem>>, vector<1x128xf32>
    %11 = vector.broadcast %10 : vector<1x128xf32> to vector<8x128xf32>
    %12 = arith.addf %9, %11 : vector<8x128xf32>
    %13 = math.tanh %12 : vector<8x128xf32>
    %c0_9 = arith.constant 0 : index
    %c0_10 = arith.constant 0 : index
    %14 = vector.load %arg8[%c0_9, %c0_10] : memref<128x128xf32, #tpu.memory_space<vmem>>, vector<128x128xf32>
    %cst_11 = arith.constant dense<0.000000e+00> : vector<8x128xf32>
    %15 = tpu.matmul %13, %14, %cst_11 {dimension_numbers = #tpu.dot_dimension_numbers<[1], [0], [0], [1], [0, 0, 1, 1], [], []>} : vector<8x128xf32>, vector<128x128xf32>, vector<8x128xf32> -> vector<8x128xf32>
    %c0_12 = arith.constant 0 : index
    %c0_13 = arith.constant 0 : index
    %16 = vector.load %arg9[%c0_12, %c0_13] : memref<1x128xf32, #tpu.memory_space<vmem>>, vector<1x128xf32>
    %17 = vector.broadcast %16 : vector<1x128xf32> to vector<8x128xf32>
    %18 = arith.addf %15, %17 : vector<8x128xf32>
    %19 = math.tanh %18 : vector<8x128xf32>
    %c0_14 = arith.constant 0 : index
    %c0_15 = arith.constant 0 : index
    %20 = vector.load %arg10[%c0_14, %c0_15] : memref<1x128xf32, #tpu.memory_space<vmem>>, vector<1x128xf32>
    %c0_16 = arith.constant 0 : index
    %c0_17 = arith.constant 0 : index
    %21 = vector.load %arg11[%c0_16, %c0_17] : memref<1x128xf32, #tpu.memory_space<vmem>>, vector<1x128xf32>
    %22 = vector.broadcast %20 : vector<1x128xf32> to vector<8x128xf32>
    %23 = arith.mulf %19, %22 : vector<8x128xf32>
    %24 = vector.broadcast %21 : vector<1x128xf32> to vector<8x128xf32>
    %25 = arith.addf %23, %24 : vector<8x128xf32>
    %26 = arith.mulf %25, %7 : vector<8x128xf32>
    %cst_18 = arith.constant dense<0.000000e+00> : vector<8xf32>
    %27 = vector.multi_reduction <add>, %26, %cst_18 [1] : vector<8x128xf32> to vector<8xf32>
    %28 = vector.shape_cast %27 : vector<8xf32> to vector<8x1xf32>
    %c0_19 = arith.constant 0 : index
    %c0_20 = arith.constant 0 : index
    %29 = vector.load %arg2[%c0_19, %c0_20] : memref<8x1xi32, #tpu.memory_space<vmem>>, vector<8x1xi32>
    %c0_21 = arith.constant 0 : index
    %c0_22 = arith.constant 0 : index
    %30 = vector.load %arg5[%c0_21, %c0_22] : memref<1x2xi32, #tpu.memory_space<vmem>>, vector<1x2xi32>
    %31 = vector.broadcast %29 : vector<8x1xi32> to vector<8x2xi32>
    %32 = vector.broadcast %30 : vector<1x2xi32> to vector<8x2xi32>
    %33 = arith.cmpi eq, %31, %32 : vector<8x2xi32>
    %34 = arith.extui %33 : vector<8x2xi1> to vector<8x2xi32>
    %35 = arith.sitofp %34 : vector<8x2xi32> to vector<8x2xf32>
    %36 = vector.broadcast %28 : vector<8x1xf32> to vector<8x2xf32>
    %37 = arith.mulf %35, %36 : vector<8x2xf32>
    %cst_23 = arith.constant dense<0.000000e+00> : vector<2xf32>
    %38 = vector.multi_reduction <add>, %37, %cst_23 [0] : vector<8x2xf32> to vector<2xf32>
    %39 = vector.shape_cast %38 : vector<2xf32> to vector<1x2xf32>
    %40 = vector.shape_cast %39 : vector<1x2xf32> to vector<1x1x2xf32>
    %c0_24 = arith.constant 0 : index
    %c0_25 = arith.constant 0 : index
    %c0_26 = arith.constant 0 : index
    %41 = vector.load %arg12[%c0_24, %c0_25, %c0_26] : memref<1x1x2xf32, #tpu.memory_space<vmem>>, vector<1x1x2xf32>
    tpu.vector_store %arg12[%c0_24, %c0_25, %c0_26], %40 {strides = array<i32>} : memref<1x1x2xf32, #tpu.memory_space<vmem>>, vector<1x1x2xf32>,
    %42 = vector.broadcast %20 : vector<1x128xf32> to vector<8x128xf32>
    %43 = arith.mulf %42, %7 : vector<8x128xf32>
    %44 = arith.mulf %19, %19 : vector<8x128xf32>
    %cst_27 = arith.constant 1.000000e+00 : f32
    %45 = vector.broadcast %cst_27 : f32 to vector<8x128xf32>
    %46 = arith.subf %45, %44 : vector<8x128xf32>
    %47 = arith.mulf %43, %46 : vector<8x128xf32>
    %c0_28 = arith.constant 0 : index
    %c0_29 = arith.constant 0 : index
    %48 = vector.load %arg8[%c0_28, %c0_29] : memref<128x128xf32, #tpu.memory_space<vmem>>, vector<128x128xf32>
    %cst_30 = arith.constant dense<0.000000e+00> : vector<8x128xf32>
    %49 = tpu.matmul %47, %48, %cst_30 {dimension_numbers = #tpu.dot_dimension_numbers<[1], [1], [0], [0], [0, 0, 1, 0], [], []>} : vector<8x128xf32>, vector<128x128xf32>, vector<8x128xf32> -> vector<8x128xf32>
    %50 = arith.mulf %13, %13 : vector<8x128xf32>
    %cst_31 = arith.constant 1.000000e+00 : f32
    %51 = vector.broadcast %cst_31 : f32 to vector<8x128xf32>
    %52 = arith.subf %51, %50 : vector<8x128xf32>
    %53 = arith.mulf %49, %52 : vector<8x128xf32>
    %c0_32 = arith.constant 0 : index
    %c0_33 = arith.constant 0 : index
    %54 = vector.load %arg6[%c0_32, %c0_33] : memref<128x128xf32, #tpu.memory_space<vmem>>, vector<128x128xf32>
    %cst_34 = arith.constant dense<0.000000e+00> : vector<8x128xf32>
    %55 = tpu.matmul %53, %54, %cst_34 {dimension_numbers = #tpu.dot_dimension_numbers<[1], [1], [0], [0], [0, 0, 1, 0], [], []>} : vector<8x128xf32>, vector<128x128xf32>, vector<8x128xf32> -> vector<8x128xf32>
    %c0_35 = arith.constant 0 : index
    %c0_36 = arith.constant 0 : index
    %56 = vector.load %arg13[%c0_35, %c0_36] : memref<8x128xf32, #tpu.memory_space<vmem>>, vector<8x128xf32>
    tpu.vector_store %arg13[%c0_35, %c0_36], %55 {strides = array<i32>} : memref<8x128xf32, #tpu.memory_space<vmem>>, vector<8x128xf32>,
    return
  }
  func.func @transform_0(%arg0: i32) -> (i32, i32) {
    %c0_i32 = arith.constant 0 : i32
    %c0_i32_0 = arith.constant 0 : i32
    return %arg0, %c0_i32 : i32, i32
  }
  func.func @transform_1(%arg0: i32) -> (i32, i32) {
    %c0_i32 = arith.constant 0 : i32
    %c0_i32_0 = arith.constant 0 : i32
    return %arg0, %c0_i32 : i32, i32
  }
  func.func @transform_2(%arg0: i32) -> (i32, i32) {
    %c0_i32 = arith.constant 0 : i32
    %c0_i32_0 = arith.constant 0 : i32
    return %arg0, %c0_i32 : i32, i32
  }
  func.func @transform_3(%arg0: i32) -> (i32, i32) {
    %c0_i32 = arith.constant 0 : i32
    %c0_i32_0 = arith.constant 0 : i32
    %c0_i32_1 = arith.constant 0 : i32
    return %c0_i32, %c0_i32_0 : i32, i32
  }
  func.func @transform_4(%arg0: i32) -> (i32, i32) {
    %c0_i32 = arith.constant 0 : i32
    %c0_i32_0 = arith.constant 0 : i32
    %c0_i32_1 = arith.constant 0 : i32
    return %c0_i32, %c0_i32_0 : i32, i32
  }
  func.func @transform_5(%arg0: i32) -> (i32, i32) {
    %c0_i32 = arith.constant 0 : i32
    %c0_i32_0 = arith.constant 0 : i32
    %c0_i32_1 = arith.constant 0 : i32
    return %c0_i32, %c0_i32_0 : i32, i32
  }
  func.func @transform_6(%arg0: i32) -> (i32, i32) {
    %c0_i32 = arith.constant 0 : i32
    %c0_i32_0 = arith.constant 0 : i32
    %c0_i32_1 = arith.constant 0 : i32
    return %c0_i32, %c0_i32_0 : i32, i32
  }
  func.func @transform_7(%arg0: i32) -> (i32, i32) {
    %c0_i32 = arith.constant 0 : i32
    %c0_i32_0 = arith.constant 0 : i32
    %c0_i32_1 = arith.constant 0 : i32
    return %c0_i32, %c0_i32_0 : i32, i32
  }
  func.func @transform_8(%arg0: i32) -> (i32, i32) {
    %c0_i32 = arith.constant 0 : i32
    %c0_i32_0 = arith.constant 0 : i32
    %c0_i32_1 = arith.constant 0 : i32
    return %c0_i32, %c0_i32_0 : i32, i32
  }
  func.func @transform_9(%arg0: i32) -> (i32, i32) {
    %c0_i32 = arith.constant 0 : i32
    %c0_i32_0 = arith.constant 0 : i32
    %c0_i32_1 = arith.constant 0 : i32
    return %c0_i32, %c0_i32_0 : i32, i32
  }
  func.func @transform_10(%arg0: i32) -> (i32, i32) {
    %c0_i32 = arith.constant 0 : i32
    %c0_i32_0 = arith.constant 0 : i32
    %c0_i32_1 = arith.constant 0 : i32
    return %c0_i32, %c0_i32_0 : i32, i32
  }
  func.func @transform_11(%arg0: i32) -> (i32, i32, i32) {
    %c0_i32 = arith.constant 0 : i32
    %c0_i32_0 = arith.constant 0 : i32
    %c0_i32_1 = arith.constant 0 : i32
    return %arg0, %c0_i32, %c0_i32_0 : i32, i32, i32
  }
  func.func @transform_12(%arg0: i32) -> (i32, i32) {
    %c0_i32 = arith.constant 0 : i32
    %c0_i32_0 = arith.constant 0 : i32
    return %arg0, %c0_i32 : i32, i32
  }
}

</mosaic_0001>

<llo_original>
// kernel: tpu_custom_call.1
$region0: #{tpu_custom_call.1}
  #allocation0 [shape = 'u32[]', space=smem, size = 0x4, offset = 0x4, fixed_abs, tag = 'smem constant byte address 0x4 - core index']
  #allocation1 [shape = 'u32[144,128]{1,0:T(1,128)}', space=vmem, size = 0x12000, scoped, tag = 'internal scratch']
  %s0 = inlined_call_operand.vmem [shape: s32[8,1], index: 0, kind: input, shape index: {}]
  %s1 = inlined_call_operand.vmem [shape: s32[8,1], index: 1, kind: input, shape index: {}]
  %s2 = inlined_call_operand.vmem [shape: f32[8,128], index: 2, kind: input, shape index: {}]
  %s3 = inlined_call_operand.vmem [shape: s32[1,128], index: 3, kind: input, shape index: {}]
  %s4 = inlined_call_operand.vmem [shape: s32[1,2], index: 4, kind: input, shape index: {}]
  %s5 = inlined_call_operand.hbm [shape: f32[128,128], index: 5, kind: input, shape index: {}]
  %s6 = inlined_call_operand.vmem [shape: f32[1,128], index: 6, kind: input, shape index: {}]
  %s7 = inlined_call_operand.hbm [shape: f32[128,128], index: 7, kind: input, shape index: {}]
  %s8 = inlined_call_operand.vmem [shape: f32[1,128], index: 8, kind: input, shape index: {}]
  %s9 = inlined_call_operand.vmem [shape: f32[1,128], index: 9, kind: input, shape index: {}]
  %s10 = inlined_call_operand.vmem [shape: f32[1,128], index: 10, kind: input, shape index: {}]
  %s11 = inlined_call_operand.hbm [shape: f32[1,1,2], index: 11, kind: output, shape index: {0}]
  %s12 = inlined_call_operand.hbm [shape: f32[8,128], index: 12, kind: output, shape index: {1}]
  %13 = xla_tuple %s11, %s12
  %s14 = sld [smem:[#allocation0]]
  $region70: #{tpu_custom_call.1} parent=0
    _
  %s16 = ssub.s32 1, %s14
  %s17 = scalar_select 0, %s16, %s14
  $region1: #{tpu_custom_call.1} parent=0
    #allocation2 [shape = 'u8[65536]{0}', space=vmem, size = 0x10000, scoped, tag = 'input window, operand 5, single buffered']
    #allocation3 [shape = 's32[1]{0}', space=sflag, size = 0x4, scoped, tag = 'scoped memory for tpu_custom_call.1']
    #allocation4 [shape = 's32[1]{0}', space=sflag, size = 0x4, scoped, tag = 'scoped memory for tpu_custom_call.1']
    #allocation5 [shape = 'u8[65536]{0}', space=vmem, size = 0x10000, scoped, tag = 'input window, operand 7, single buffered']
    #allocation6 [shape = 's32[1]{0}', space=sflag, size = 0x4, scoped, tag = 'scoped memory for tpu_custom_call.1']
    #allocation7 [shape = 'u8[512]{0}', space=vmem, size = 0x400, scoped, tag = 'output window, operand 0, single buffered']
    #allocation8 [shape = 'u8[4096]{0}', space=vmem, size = 0x1000, scoped, tag = 'output window, operand 1, single buffered']
    #allocation9 [shape = 's32[1]{0}', space=sflag, size = 0x4, scoped, tag = 'scoped memory for tpu_custom_call.1']
    %18 = vsyncpa [#allocation3], 0
    %19 = vsyncpa [#allocation6], 0
    %20 = vsyncpa [#allocation4], 0
    %21 = vsyncpa [#allocation9], 0
    // Predicated region
    $region2: #{tpu_custom_call.1} parent=1 // pred_check
      _
    $region3: #{tpu_custom_call.1} parent=1 // pred_check_branch
      %23 = sbr.rel (0) target = $region5
    $region4: #{tpu_custom_call.1} parent=1 // pred_region
      _
    $region5: #{tpu_custom_call.1} parent=1 // pred_fallthru
      _
    // Predicated region
    $region6: #{tpu_custom_call.1} parent=1 // pred_check
      _
    $region7: #{tpu_custom_call.1} parent=1 // pred_check_branch
      %25 = sbr.rel (0) target = $region9
    $region8: #{tpu_custom_call.1} parent=1 // pred_region
      _
    $region9: #{tpu_custom_call.1} parent=1 // pred_fallthru
      _
    // Predicated region
    $region10: #{tpu_custom_call.1} parent=1 // pred_check
      _
    $region11: #{tpu_custom_call.1} parent=1 // pred_check_branch
      %27 = sbr.rel (0) target = $region13
    $region12: #{tpu_custom_call.1} parent=1 // pred_region
      _
    $region13: #{tpu_custom_call.1} parent=1 // pred_fallthru
      _
    // Predicated region
    $region14: #{tpu_custom_call.1} parent=1 // pred_check
      _
    $region15: #{tpu_custom_call.1} parent=1 // pred_check_branch
      %29 = sbr.rel (0) target = $region17
    $region16: #{tpu_custom_call.1} parent=1 // pred_region
      _
    $region17: #{tpu_custom_call.1} parent=1 // pred_fallthru
      _
    // Predicated region
    $region18: #{tpu_custom_call.1} parent=1 // pred_check
      _
    $region19: #{tpu_custom_call.1} parent=1 // pred_check_branch
      %31 = sbr.rel (0) target = $region21
    $region20: #{tpu_custom_call.1} parent=1 // pred_region
      _
    $region21: #{tpu_custom_call.1} parent=1 // pred_fallthru
      _
    // Predicated region
    $region22: #{tpu_custom_call.1} parent=1 // pred_check
      _
    $region23: #{tpu_custom_call.1} parent=1 // pred_check_branch
      %33 = sbr.rel (0) target = $region25
    $region24: #{tpu_custom_call.1} parent=1 // pred_region
      %s35 = ssub.s32 2048, 2048
      %36 = vsyncadd [#allocation3], %s35
      %s37 = sshll.u32 [#allocation2], 4
      %s38 = int_to_ptr.vmem [resolvable:$true] %s37
      %43 = dma.hbm_to_vmem [thread:$0]  %s5, 2048, %s38, [#allocation3], 128, 128, 8
    $region25: #{tpu_custom_call.1} parent=1 // pred_fallthru
      _
    // Predicated region
    $region26: #{tpu_custom_call.1} parent=1 // pred_check
      _
    $region27: #{tpu_custom_call.1} parent=1 // pred_check_branch
      %45 = sbr.rel (0) target = $region29
    $region28: #{tpu_custom_call.1} parent=1 // pred_region
      _
    $region29: #{tpu_custom_call.1} parent=1 // pred_fallthru
      _
    // Predicated region
    $region30: #{tpu_custom_call.1} parent=1 // pred_check
      _
    $region31: #{tpu_custom_call.1} parent=1 // pred_check_branch
      %47 = sbr.rel (0) target = $region33
    $region32: #{tpu_custom_call.1} parent=1 // pred_region
      %s49 = ssub.s32 2048, 2048
      %50 = vsyncadd [#allocation6], %s49
      %s51 = sshll.u32 [#allocation5], 4
      %s52 = int_to_ptr.vmem [resolvable:$true] %s51
      %57 = dma.hbm_to_vmem [thread:$0]  %s7, 2048, %s52, [#allocation6], 128, 128, 8
    $region33: #{tpu_custom_call.1} parent=1 // pred_fallthru
      _
    // Predicated region
    $region34: #{tpu_custom_call.1} parent=1 // pred_check
      _
    $region35: #{tpu_custom_call.1} parent=1 // pred_check_branch
      %59 = sbr.rel (0) target = $region37
    $region36: #{tpu_custom_call.1} parent=1 // pred_region
      _
    $region37: #{tpu_custom_call.1} parent=1 // pred_fallthru
      _
    // Predicated region
    $region38: #{tpu_custom_call.1} parent=1 // pred_check
      _
    $region39: #{tpu_custom_call.1} parent=1 // pred_check_branch
      %61 = sbr.rel (0) target = $region41
    $region40: #{tpu_custom_call.1} parent=1 // pred_region
      _
    $region41: #{tpu_custom_call.1} parent=1 // pred_fallthru
      _
    // Predicated region
    $region42: #{tpu_custom_call.1} parent=1 // pred_check
      _
    $region43: #{tpu_custom_call.1} parent=1 // pred_check_branch
      %63 = sbr.rel (0) target = $region45
    $region44: #{tpu_custom_call.1} parent=1 // pred_region
      _
    $region45: #{tpu_custom_call.1} parent=1 // pred_fallthru
      _
    // Predicated region
    $region46: #{tpu_custom_call.1} parent=1 // pred_check
      _
    $region47: #{tpu_custom_call.1} parent=1 // pred_check_branch
      %65 = sbr.rel (0) target = $region49
    $region48: #{tpu_custom_call.1} parent=1 // pred_region
      %66 = dma.done [#allocation3], 2048
    $region49: #{tpu_custom_call.1} parent=1 // pred_fallthru
      _
    // Predicated region
    $region50: #{tpu_custom_call.1} parent=1 // pred_check
      _
    $region51: #{tpu_custom_call.1} parent=1 // pred_check_branch
      %68 = sbr.rel (0) target = $region53
    $region52: #{tpu_custom_call.1} parent=1 // pred_region
      %69 = dma.done [#allocation6], 2048
    $region53: #{tpu_custom_call.1} parent=1 // pred_fallthru
      _
    %v70 = vld [vmem:[%s2] sm:$0xff]
    %v71 = vld [vmem:[%s0] sm:$0xff]
    %v72 = vld [vmem:[%s3] sm:$0x1]
    %73 = vset.pattern.permute.xlu0 0
    %74 = vperm.xlu0 %73, %v71
    %v75 = vpop.permute.xlu0 %74
    %v76 = vlaneseq
    %v77 = vshrl.u32 %v76, 7
    %v78 = vsub.s32 0, %v77
    %v79 = vrot.slane %v72, %v78
    %vm80 = vcmp.eq.s32.totalorder %v75, %v79
    %v81 = vsel %vm80, 1, 0
    %v82 = vcvt.s32.f32 %v81
    %v83 = vld [vmem:[#allocation2] sm:$0xff]
    %v84 = vld [vmem:[#allocation2 + $0x8] sm:$0xff]
    %v85 = vld [vmem:[#allocation2 + $0x10] sm:$0xff]
    %v86 = vld [vmem:[#allocation2 + $0x18] sm:$0xff]
    %v87 = vld [vmem:[#allocation2 + $0x20] sm:$0xff]
    %v88 = vld [vmem:[#allocation2 + $0x28] sm:$0xff]
    %v89 = vld [vmem:[#allocation2 + $0x30] sm:$0xff]
    %v90 = vld [vmem:[#allocation2 + $0x38] sm:$0xff]
    %v91 = vld [vmem:[#allocation2 + $0x40] sm:$0xff]
    %v92 = vld [vmem:[#allocation2 + $0x48] sm:$0xff]
    %v93 = vld [vmem:[#allocation2 + $0x50] sm:$0xff]
    %v94 = vld [vmem:[#allocation2 + $0x58] sm:$0xff]
    %v95 = vld [vmem:[#allocation2 + $0x60] sm:$0xff]
    %v96 = vld [vmem:[#allocation2 + $0x68] sm:$0xff]
    %v97 = vld [vmem:[#allocation2 + $0x70] sm:$0xff]
    %v98 = vld [vmem:[#allocation2 + $0x78] sm:$0xff]
    %v99 = vld [vmem:[%s6] sm:$0x1]
    %v101 = vlaneseq
    %v102 = vshrl.u32 %v101, 7
    %v103 = vsub.s32 0, %v102
    %v104 = vrot.slane %v99, %v103
    %106 = vmatprep.subr.mxu0 0.0
    %107 = vmatpush1.msra.mxu0 %v98
    %108 = vmatprep.subr.mxu0 0.0
    %109 = vmatpush1.msra.mxu0 %v97
    %110 = vmatprep.subr.mxu0 0.0
    %111 = vmatpush1.msra.mxu0 %v96
    %112 = vmatprep.subr.mxu0 0.0
    %113 = vmatpush1.msra.mxu0 %v95
    %114 = vmatprep.subr.mxu0 0.0
    %115 = vmatpush1.msra.mxu0 %v94
    %116 = vmatprep.subr.mxu0 0.0
    %117 = vmatpush1.msra.mxu0 %v93
    %118 = vmatprep.subr.mxu0 0.0
    %119 = vmatpush1.msra.mxu0 %v92
    %120 = vmatprep.subr.mxu0 0.0
    %121 = vmatpush1.msra.mxu0 %v91
    %122 = vmatprep.subr.mxu0 0.0
    %123 = vmatpush1.msra.mxu0 %v90
    %124 = vmatprep.subr.mxu0 0.0
    %125 = vmatpush1.msra.mxu0 %v89
    %126 = vmatprep.subr.mxu0 0.0
    %127 = vmatpush1.msra.mxu0 %v88
    %128 = vmatprep.subr.mxu0 0.0
    %129 = vmatpush1.msra.mxu0 %v87
    %130 = vmatprep.subr.mxu0 0.0
    %131 = vmatpush1.msra.mxu0 %v86
    %132 = vmatprep.subr.mxu0 0.0
    %133 = vmatpush1.msra.mxu0 %v85
    %134 = vmatprep.subr.mxu0 0.0
    %135 = vmatpush1.msra.mxu0 %v84
    %136 = vmatprep.subr.mxu0 0.0
    %137 = vmatpush1.msra.mxu0 %v83
    %138 = vmatprep.subr.mxu0 0.0
    %139 = vmatpush2.msra.mxu0 0.0
    %140 = vmatprep.subr.mxu0 0.0
    %141 = vmatpush2.msra.mxu0 0.0
    %142 = vmatprep.subr.mxu0 0.0
    %143 = vmatpush2.msra.mxu0 0.0
    %144 = vmatprep.subr.mxu0 0.0
    %145 = vmatpush2.msra.mxu0 0.0
    %146 = vmatprep.subr.mxu0 0.0
    %147 = vmatpush2.msra.mxu0 0.0
    %148 = vmatprep.subr.mxu0 0.0
    %149 = vmatpush2.msra.mxu0 0.0
    %150 = vmatprep.subr.mxu0 0.0
    %151 = vmatpush2.msra.mxu0 0.0
    %152 = vmatprep.subr.mxu0 0.0
    %153 = vmatpush2.msra.mxu0 0.0
    %154 = vmatprep.subr.mxu0 0.0
    %155 = vmatpush2.msra.mxu0 0.0
    %156 = vmatprep.subr.mxu0 0.0
    %157 = vmatpush2.msra.mxu0 0.0
    %158 = vmatprep.subr.mxu0 0.0
    %159 = vmatpush2.msra.mxu0 0.0
    %160 = vmatprep.subr.mxu0 0.0
    %161 = vmatpush2.msra.mxu0 0.0
    %162 = vmatprep.subr.mxu0 0.0
    %163 = vmatpush2.msra.mxu0 0.0
    %164 = vmatprep.subr.mxu0 0.0
    %165 = vmatpush2.msra.mxu0 0.0
    %166 = vmatprep.subr.mxu0 0.0
    %167 = vmatpush2.msra.mxu0 0.0
    %168 = vmatprep.subr.mxu0 0.0
    %169 = vmatpush2.msra.mxu0 0.0
    %170 = vmatprep.mubr.f32.mxu0 0.0
    %171 = vmatmul.mubr.f32.gmra.mxu0 %v70
    %v172 = vpop.f32.mrf.mxu0
    %v173 = vadd.f32 %v104, %v172
    %v174 = vpop.f32.mrf.mxu0
    %175 = vdwg.mxu0
    %v176 = vtanh.pop %v173
    %v177 = vld [vmem:[#allocation5] sm:$0xff]
    %v178 = vld [vmem:[#allocation5 + $0x8] sm:$0xff]
    %v179 = vld [vmem:[#allocation5 + $0x10] sm:$0xff]
    %v180 = vld [vmem:[#allocation5 + $0x18] sm:$0xff]
    %v181 = vld [vmem:[#allocation5 + $0x20] sm:$0xff]
    %v182 = vld [vmem:[#allocation5 + $0x28] sm:$0xff]
    %v183 = vld [vmem:[#allocation5 + $0x30] sm:$0xff]
    %v184 = vld [vmem:[#allocation5 + $0x38] sm:$0xff]
    %v185 = vld [vmem:[#allocation5 + $0x40] sm:$0xff]
    %v186 = vld [vmem:[#allocation5 + $0x48] sm:$0xff]
    %v187 = vld [vmem:[#allocation5 + $0x50] sm:$0xff]
    %v188 = vld [vmem:[#allocation5 + $0x58] sm:$0xff]
    %v189 = vld [vmem:[#allocation5 + $0x60] sm:$0xff]
    %v190 = vld [vmem:[#allocation5 + $0x68] sm:$0xff]
    %v191 = vld [vmem:[#allocation5 + $0x70] sm:$0xff]
    %v192 = vld [vmem:[#allocation5 + $0x78] sm:$0xff]
    %v193 = vld [vmem:[%s8] sm:$0x1]
    %v195 = vlaneseq
    %v196 = vshrl.u32 %v195, 7
    %v197 = vsub.s32 0, %v196
    %v198 = vrot.slane %v193, %v197
    %200 = vmatprep.subr.mxu0 0.0
    %201 = vmatpush1.msra.mxu0 %v192
    %202 = vmatprep.subr.mxu0 0.0
    %203 = vmatpush1.msra.mxu0 %v191
    %204 = vmatprep.subr.mxu0 0.0
    %205 = vmatpush1.msra.mxu0 %v190
    %206 = vmatprep.subr.mxu0 0.0
    %207 = vmatpush1.msra.mxu0 %v189
    %208 = vmatprep.subr.mxu0 0.0
    %209 = vmatpush1.msra.mxu0 %v188
    %210 = vmatprep.subr.mxu0 0.0
    %211 = vmatpush1.msra.mxu0 %v187
    %212 = vmatprep.subr.mxu0 0.0
    %213 = vmatpush1.msra.mxu0 %v186
    %214 = vmatprep.subr.mxu0 0.0
    %215 = vmatpush1.msra.mxu0 %v185
    %216 = vmatprep.subr.mxu0 0.0
    %217 = vmatpush1.msra.mxu0 %v184
    %218 = vmatprep.subr.mxu0 0.0
    %219 = vmatpush1.msra.mxu0 %v183
    %220 = vmatprep.subr.mxu0 0.0
    %221 = vmatpush1.msra.mxu0 %v182
    %222 = vmatprep.subr.mxu0 0.0
    %223 = vmatpush1.msra.mxu0 %v181
    %224 = vmatprep.subr.mxu0 0.0
    %225 = vmatpush1.msra.mxu0 %v180
    %226 = vmatprep.subr.mxu0 0.0
    %227 = vmatpush1.msra.mxu0 %v179
    %228 = vmatprep.subr.mxu0 0.0
    %229 = vmatpush1.msra.mxu0 %v178
    %230 = vmatprep.subr.mxu0 0.0
    %231 = vmatpush1.msra.mxu0 %v177
    %232 = vmatprep.subr.mxu0 0.0
    %233 = vmatpush2.msra.mxu0 0.0
    %234 = vmatprep.subr.mxu0 0.0
    %235 = vmatpush2.msra.mxu0 0.0
    %236 = vmatprep.subr.mxu0 0.0
    %237 = vmatpush2.msra.mxu0 0.0
    %238 = vmatprep.subr.mxu0 0.0
    %239 = vmatpush2.msra.mxu0 0.0
    %240 = vmatprep.subr.mxu0 0.0
    %241 = vmatpush2.msra.mxu0 0.0
    %242 = vmatprep.subr.mxu0 0.0
    %243 = vmatpush2.msra.mxu0 0.0
    %244 = vmatprep.subr.mxu0 0.0
    %245 = vmatpush2.msra.mxu0 0.0
    %246 = vmatprep.subr.mxu0 0.0
    %247 = vmatpush2.msra.mxu0 0.0
    %248 = vmatprep.subr.mxu0 0.0
    %249 = vmatpush2.msra.mxu0 0.0
    %250 = vmatprep.subr.mxu0 0.0
    %251 = vmatpush2.msra.mxu0 0.0
    %252 = vmatprep.subr.mxu0 0.0
    %253 = vmatpush2.msra.mxu0 0.0
    %254 = vmatprep.subr.mxu0 0.0
    %255 = vmatpush2.msra.mxu0 0.0
    %256 = vmatprep.subr.mxu0 0.0
    %257 = vmatpush2.msra.mxu0 0.0
    %258 = vmatprep.subr.mxu0 0.0
    %259 = vmatpush2.msra.mxu0 0.0
    %260 = vmatprep.subr.mxu0 0.0
    %261 = vmatpush2.msra.mxu0 0.0
    %262 = vmatprep.subr.mxu0 0.0
    %263 = vmatpush2.msra.mxu0 0.0
    %264 = vmatprep.mubr.f32.mxu0 0.0
    %265 = vmatmul.mubr.f32.gmra.mxu0 %v176
    %v266 = vpop.f32.mrf.mxu0
    %v267 = vadd.f32 %v198, %v266
    %v268 = vpop.f32.mrf.mxu0
    %269 = vdwg.mxu0
    %v270 = vtanh.pop %v267
    %v271 = vld [vmem:[%s9] sm:$0x1]
    %v272 = vld [vmem:[%s10] sm:$0x1]
    %v274 = vlaneseq
    %v275 = vshrl.u32 %v274, 7
    %v276 = vsub.s32 0, %v275
    %v277 = vrot.slane %v271, %v276
    %v279 = vmul.f32 %v270, %v277
    %v281 = vlaneseq
    %v282 = vshrl.u32 %v281, 7
    %v283 = vsub.s32 0, %v282
    %v284 = vrot.slane %v272, %v283
    %v286 = vadd.f32 %v279, %v284
    %v287 = vmul.f32 %v286, %v82
    %288 = vadd.xlane.f32.xlu0 %v287
    %v289 = vpop.xlane.xlu0 %288
    %v290 = vld [vmem:[%s1] sm:$0xff]
    %v291 = vld [vmem:[%s4] sm:$0x1]
    %292 = vset.pattern.permute.xlu0 0
    %293 = vperm.xlu0 %292, %v290
    %v294 = vpop.permute.xlu0 %293
    %v295 = vlaneseq
    %v296 = vshrl.u32 %v295, 7
    %v297 = vsub.s32 0, %v296
    %v298 = vrot.slane %v291, %v297
    %vm299 = vcmp.eq.s32.totalorder %v294, %v298
    %v300 = vsel %vm299, 1, 0
    %v301 = vcvt.s32.f32 %v300
    %v302 = vmul.f32 %v301, %v289
    %vm303 = vcmask 15360
    %v304 = vsel %vm303, %v302, 0.0
    %v305 = vrot.slane %v304, 4
    %v306 = vadd.f32 %v304, %v305
    %v307 = vrot.slane %v306, 2
    %v308 = vadd.f32 %v306, %v307
    %v309 = vrot.slane %v308, 1
    %v310 = vadd.f32 %v308, %v309
    %vm311 = vcmask 8192
    %312 = vst.msk [vmem:[#allocation7] sm:$0x1] %vm311, %v310
    %v313 = vmul.f32 %v277, %v82
    %v314 = vmul.f32 %v270, %v270
    %v315 = vsub.f32 1.0, %v314
    %v316 = vmul.f32 %v313, %v315
    %v317 = vld [vmem:[#allocation5] sm:$0xff]
    %v318 = vld [vmem:[#allocation5 + $0x8] sm:$0xff]
    %v319 = vld [vmem:[#allocation5 + $0x10] sm:$0xff]
    %v320 = vld [vmem:[#allocation5 + $0x18] sm:$0xff]
    %v321 = vld [vmem:[#allocation5 + $0x20] sm:$0xff]
    %v322 = vld [vmem:[#allocation5 + $0x28] sm:$0xff]
    %v323 = vld [vmem:[#allocation5 + $0x30] sm:$0xff]
    %v324 = vld [vmem:[#allocation5 + $0x38] sm:$0xff]
    %v325 = vld [vmem:[#allocation5 + $0x40] sm:$0xff]
    %v326 = vld [vmem:[#allocation5 + $0x48] sm:$0xff]
    %v327 = vld [vmem:[#allocation5 + $0x50] sm:$0xff]
    %v328 = vld [vmem:[#allocation5 + $0x58] sm:$0xff]
    %v329 = vld [vmem:[#allocation5 + $0x60] sm:$0xff]
    %v330 = vld [vmem:[#allocation5 + $0x68] sm:$0xff]
    %v331 = vld [vmem:[#allocation5 + $0x70] sm:$0xff]
    %v332 = vld [vmem:[#allocation5 + $0x78] sm:$0xff]
    %333 = vmatprep.subr.mxu0 0.0
    %334 = vmatpush1.xpose.msra.mxu0 %v332
    %335 = vmatprep.subr.mxu0 0.0
    %336 = vmatpush1.xpose.msra.mxu0 %v331
    %337 = vmatprep.subr.mxu0 0.0
    %338 = vmatpush1.xpose.msra.mxu0 %v330
    %339 = vmatprep.subr.mxu0 0.0
    %340 = vmatpush1.xpose.msra.mxu0 %v329
    %341 = vmatprep.subr.mxu0 0.0
    %342 = vmatpush1.xpose.msra.mxu0 %v328
    %343 = vmatprep.subr.mxu0 0.0
    %344 = vmatpush1.xpose.msra.mxu0 %v327
    %345 = vmatprep.subr.mxu0 0.0
    %346 = vmatpush1.xpose.msra.mxu0 %v326
    %347 = vmatprep.subr.mxu0 0.0
    %348 = vmatpush1.xpose.msra.mxu0 %v325
    %349 = vmatprep.subr.mxu0 0.0
    %350 = vmatpush1.xpose.msra.mxu0 %v324
    %351 = vmatprep.subr.mxu0 0.0
    %352 = vmatpush1.xpose.msra.mxu0 %v323
    %353 = vmatprep.subr.mxu0 0.0
    %354 = vmatpush1.xpose.msra.mxu0 %v322
    %355 = vmatprep.subr.mxu0 0.0
    %356 = vmatpush1.xpose.msra.mxu0 %v321
    %357 = vmatprep.subr.mxu0 0.0
    %358 = vmatpush1.xpose.msra.mxu0 %v320
    %359 = vmatprep.subr.mxu0 0.0
    %360 = vmatpush1.xpose.msra.mxu0 %v319
    %361 = vmatprep.subr.mxu0 0.0
    %362 = vmatpush1.xpose.msra.mxu0 %v318
    %363 = vmatprep.subr.mxu0 0.0
    %364 = vmatpush1.xpose.msra.mxu0 %v317
    %365 = vmatprep.subr.mxu0 0.0
    %366 = vmatpush2.xpose.msra.mxu0 0.0
    %367 = vmatprep.subr.mxu0 0.0
    %368 = vmatpush2.xpose.msra.mxu0 0.0
    %369 = vmatprep.subr.mxu0 0.0
    %370 = vmatpush2.xpose.msra.mxu0 0.0
    %371 = vmatprep.subr.mxu0 0.0
    %372 = vmatpush2.xpose.msra.mxu0 0.0
    %373 = vmatprep.subr.mxu0 0.0
    %374 = vmatpush2.xpose.msra.mxu0 0.0
    %375 = vmatprep.subr.mxu0 0.0
    %376 = vmatpush2.xpose.msra.mxu0 0.0
    %377 = vmatprep.subr.mxu0 0.0
    %378 = vmatpush2.xpose.msra.mxu0 0.0
    %379 = vmatprep.subr.mxu0 0.0
    %380 = vmatpush2.xpose.msra.mxu0 0.0
    %381 = vmatprep.subr.mxu0 0.0
    %382 = vmatpush2.xpose.msra.mxu0 0.0
    %383 = vmatprep.subr.mxu0 0.0
    %384 = vmatpush2.xpose.msra.mxu0 0.0
    %385 = vmatprep.subr.mxu0 0.0
    %386 = vmatpush2.xpose.msra.mxu0 0.0
    %387 = vmatprep.subr.mxu0 0.0
    %388 = vmatpush2.xpose.msra.mxu0 0.0
    %389 = vmatprep.subr.mxu0 0.0
    %390 = vmatpush2.xpose.msra.mxu0 0.0
    %391 = vmatprep.subr.mxu0 0.0
    %392 = vmatpush2.xpose.msra.mxu0 0.0
    %393 = vmatprep.subr.mxu0 0.0
    %394 = vmatpush2.xpose.msra.mxu0 0.0
    %395 = vmatprep.subr.mxu0 0.0
    %396 = vmatpush2.xpose.msra.mxu0 0.0
    %397 = vmatprep.mubr.f32.mxu0 0.0
    %398 = vmatmul.mubr.f32.gmra.mxu0 %v316
    %v399 = vpop.f32.mrf.mxu0
    %v400 = vadd.f32 0.0, %v399
    %v401 = vpop.f32.mrf.mxu0
    %402 = vdwg.mxu0
    %v403 = vmul.f32 %v176, %v176
    %v404 = vsub.f32 1.0, %v403
    %v405 = vmul.f32 %v400, %v404
    %v406 = vld [vmem:[#allocation2] sm:$0xff]
    %v407 = vld [vmem:[#allocation2 + $0x8] sm:$0xff]
    %v408 = vld [vmem:[#allocation2 + $0x10] sm:$0xff]
    %v409 = vld [vmem:[#allocation2 + $0x18] sm:$0xff]
    %v410 = vld [vmem:[#allocation2 + $0x20] sm:$0xff]
    %v411 = vld [vmem:[#allocation2 + $0x28] sm:$0xff]
    %v412 = vld [vmem:[#allocation2 + $0x30] sm:$0xff]
    %v413 = vld [vmem:[#allocation2 + $0x38] sm:$0xff]
    %v414 = vld [vmem:[#allocation2 + $0x40] sm:$0xff]
    %v415 = vld [vmem:[#allocation2 + $0x48] sm:$0xff]
    %v416 = vld [vmem:[#allocation2 + $0x50] sm:$0xff]
    %v417 = vld [vmem:[#allocation2 + $0x58] sm:$0xff]
    %v418 = vld [vmem:[#allocation2 + $0x60] sm:$0xff]
    %v419 = vld [vmem:[#allocation2 + $0x68] sm:$0xff]
    %v420 = vld [vmem:[#allocation2 + $0x70] sm:$0xff]
    %v421 = vld [vmem:[#allocation2 + $0x78] sm:$0xff]
    %422 = vmatprep.subr.mxu0 0.0
    %423 = vmatpush1.xpose.msra.mxu0 %v421
    %424 = vmatprep.subr.mxu0 0.0
    %425 = vmatpush1.xpose.msra.mxu0 %v420
    %426 = vmatprep.subr.mxu0 0.0
    %427 = vmatpush1.xpose.msra.mxu0 %v419
    %428 = vmatprep.subr.mxu0 0.0
    %429 = vmatpush1.xpose.msra.mxu0 %v418
    %430 = vmatprep.subr.mxu0 0.0
    %431 = vmatpush1.xpose.msra.mxu0 %v417
    %432 = vmatprep.subr.mxu0 0.0
    %433 = vmatpush1.xpose.msra.mxu0 %v416
    %434 = vmatprep.subr.mxu0 0.0
    %435 = vmatpush1.xpose.msra.mxu0 %v415
    %436 = vmatprep.subr.mxu0 0.0
    %437 = vmatpush1.xpose.msra.mxu0 %v414
    %438 = vmatprep.subr.mxu0 0.0
    %439 = vmatpush1.xpose.msra.mxu0 %v413
    %440 = vmatprep.subr.mxu0 0.0
    %441 = vmatpush1.xpose.msra.mxu0 %v412
    %442 = vmatprep.subr.mxu0 0.0
    %443 = vmatpush1.xpose.msra.mxu0 %v411
    %444 = vmatprep.subr.mxu0 0.0
    %445 = vmatpush1.xpose.msra.mxu0 %v410
    %446 = vmatprep.subr.mxu0 0.0
    %447 = vmatpush1.xpose.msra.mxu0 %v409
    %448 = vmatprep.subr.mxu0 0.0
    %449 = vmatpush1.xpose.msra.mxu0 %v408
    %450 = vmatprep.subr.mxu0 0.0
    %451 = vmatpush1.xpose.msra.mxu0 %v407
    %452 = vmatprep.subr.mxu0 0.0
    %453 = vmatpush1.xpose.msra.mxu0 %v406
    %454 = vmatprep.subr.mxu0 0.0
    %455 = vmatpush2.xpose.msra.mxu0 0.0
    %456 = vmatprep.subr.mxu0 0.0
    %457 = vmatpush2.xpose.msra.mxu0 0.0
    %458 = vmatprep.subr.mxu0 0.0
    %459 = vmatpush2.xpose.msra.mxu0 0.0
    %460 = vmatprep.subr.mxu0 0.0
    %461 = vmatpush2.xpose.msra.mxu0 0.0
    %462 = vmatprep.subr.mxu0 0.0
    %463 = vmatpush2.xpose.msra.mxu0 0.0
    %464 = vmatprep.subr.mxu0 0.0
    %465 = vmatpush2.xpose.msra.mxu0 0.0
    %466 = vmatprep.subr.mxu0 0.0
    %467 = vmatpush2.xpose.msra.mxu0 0.0
    %468 = vmatprep.subr.mxu0 0.0
    %469 = vmatpush2.xpose.msra.mxu0 0.0
    %470 = vmatprep.subr.mxu0 0.0
    %471 = vmatpush2.xpose.msra.mxu0 0.0
    %472 = vmatprep.subr.mxu0 0.0
    %473 = vmatpush2.xpose.msra.mxu0 0.0
    %474 = vmatprep.subr.mxu0 0.0
    %475 = vmatpush2.xpose.msra.mxu0 0.0
    %476 = vmatprep.subr.mxu0 0.0
    %477 = vmatpush2.xpose.msra.mxu0 0.0
    %478 = vmatprep.subr.mxu0 0.0
    %479 = vmatpush2.xpose.msra.mxu0 0.0
    %480 = vmatprep.subr.mxu0 0.0
    %481 = vmatpush2.xpose.msra.mxu0 0.0
    %482 = vmatprep.subr.mxu0 0.0
    %483 = vmatpush2.xpose.msra.mxu0 0.0
    %484 = vmatprep.subr.mxu0 0.0
    %485 = vmatpush2.xpose.msra.mxu0 0.0
    %486 = vmatprep.mubr.f32.mxu0 0.0
    %487 = vmatmul.mubr.f32.gmra.mxu0 %v405
    %v488 = vpop.f32.mrf.mxu0
    %v489 = vadd.f32 0.0, %v488
    %v490 = vpop.f32.mrf.mxu0
    %491 = vdwg.mxu0
    %492 = vst [vmem:[#allocation8] sm:$0xff] %v489
    // Predicated region
    $region54: #{tpu_custom_call.1} parent=1 // pred_check
      _
    $region55: #{tpu_custom_call.1} parent=1 // pred_check_branch
      %494 = sbr.rel (0) target = $region57
    $region56: #{tpu_custom_call.1} parent=1 // pred_region
      %s496 = ssub.s32 16, 16
      %497 = vsyncadd [#allocation4], %s496
      %s499 = sshll.u32 [#allocation7], 4
      %s500 = int_to_ptr.vmem [resolvable:$true] %s499
      %502 = dma.vmem_to_hbm [thread:$0]  %s500, 16, %s11, [#allocation4]
    $region57: #{tpu_custom_call.1} parent=1 // pred_fallthru
      _
    // Predicated region
    $region58: #{tpu_custom_call.1} parent=1 // pred_check
      _
    $region59: #{tpu_custom_call.1} parent=1 // pred_check_branch
      %504 = sbr.rel (0) target = $region61
    $region60: #{tpu_custom_call.1} parent=1 // pred_region
      %s506 = ssub.s32 128, 128
      %507 = vsyncadd [#allocation9], %s506
      %s509 = sshll.u32 [#allocation8], 4
      %s510 = int_to_ptr.vmem [resolvable:$true] %s509
      %512 = dma.vmem_to_hbm [thread:$0]  %s510, 128, %s12, [#allocation9]
    $region61: #{tpu_custom_call.1} parent=1 // pred_fallthru
      _
    // Predicated region
    $region62: #{tpu_custom_call.1} parent=1 // pred_check
      _
    $region63: #{tpu_custom_call.1} parent=1 // pred_check_branch
      %514 = sbr.rel (0) target = $region65
    $region64: #{tpu_custom_call.1} parent=1 // pred_region
      %515 = dma.done [#allocation4], 16
    $region65: #{tpu_custom_call.1} parent=1 // pred_fallthru
      _
    // Predicated region
    $region66: #{tpu_custom_call.1} parent=1 // pred_check
      _
    $region67: #{tpu_custom_call.1} parent=1 // pred_check_branch
      %517 = sbr.rel (0) target = $region69
    $region68: #{tpu_custom_call.1} parent=1 // pred_region
      %518 = dma.done [#allocation9], 128
    $region69: #{tpu_custom_call.1} parent=1 // pred_fallthru
      _
    %519 = vsyncpa [#allocation3], 1
    %520 = vsyncpa [#allocation6], 1
    %521 = vsyncpa [#allocation4], 1
    %522 = vsyncpa [#allocation9], 1

</llo_original>
